<compile_context>
chip_gen: v7x
topology: tpu7x:2x2x1
jax: 0.10.0
libtpu: 0.0.40
codegen_flags: <defaults>
</compile_context>

<pallas_src>
import functools

import jax
import jax.numpy as jnp
from jax import lax
from jax.experimental import pallas as pl
from jax.experimental.pallas import tpu as pltpu

# ---- "args" from the original repo, fixed in-script ------------------------
MASK_DEPTH = 2          # args.mask_depth
PATH_PROB = 0.5         # args.path_prob
NUM_MASK_CAND = 8       # args.num_mask_cand

N = 128                 # number of graph nodes
D = 32                  # embedding dim

# Bits of the shared random draw consumed per depth step (integer-threshold
# Bernoulli).  31 usable bits (sign bit cleared in the wrapper).
FIELD_BITS = min(24, 31 // max(MASK_DEPTH, 1))
assert MASK_DEPTH * FIELD_BITS <= 31


def local_graph_kernel(adj_ref, embt_ref, bits_ref, scores_ref, lhs_ref, *,
                       depth, path_prob, field_bits):
    """LocalGraph forward (minus top-k), N-on-lanes layout.

    adj_ref:    (N, N) f32 VMEM — adjacency, un-transposed (transposed in-kernel).
    embt_ref:   (D, N) f32 VMEM — embeddings transposed (features on sublanes).
    bits_ref:   (N+1, N) i32 VMEM — rows [0:N]: dropout bit-fields, row N: Gumbel bits.
    scores_ref: (1, N) f32 VMEM — lane-dense output scores (noise added).
    lhs_ref:    (D+8, N) f32 VMEM scratch — persistent fused-matmul LHS:
                rows [0:D]=emb, row D=num, row D+1=ones, rest zero.
    """
    n = adj_ref.shape[0]
    d = embt_ref.shape[0]

    embt = embt_ref[...]                                       # (D, N) f32
    # Loop-invariant: hoisted so it hides under MXU drain slack.
    ss_emb = jnp.sum(embt * embt, axis=0, keepdims=True)       # (1, N)

    # One in-kernel XLU transpose of the square adjacency (XLU is idle here).
    # Applying the iid dropout mask in transposed coordinates is
    # distributionally identical to masking adj and transposing.
    adjt = adj_ref[...].T                                      # (N, N) f32

    mask_bits = bits_ref[0:n, :]                               # (N, N) i32
    ones_row = jnp.ones((1, n), dtype=jnp.float32)

    # ---- persistent, sublane-aligned LHS scratch ----------------------------
    lhs_ref[...] = jnp.zeros(lhs_ref.shape, dtype=jnp.float32)
    lhs_ref[0:d, :] = embt
    lhs_ref[d + 1:d + 2, :] = ones_row

    # ---- initial step: one fused f32 MXU dot gives (adj@emb)^T AND rowsum(adj)
    res0 = jnp.dot(lhs_ref[...], adjt, preferred_element_type=jnp.float32)
    order = res0[d + 1:d + 2]                                  # (1, N) rowsum(adj)
    emb_last = res0[0:d] - embt                                # fstEmbeds^T
    num_last = order                                           # fstNum^T
    emb_sum = emb_last
    num_sum = num_last

    # ---- propagation with cumulative integer-threshold edge dropout ---------
    field_mask = (1 << field_bits) - 1
    for i in range(depth):
        keep_prob = path_prob ** (i + 1)
        thr = int(round(keep_prob * (1 << field_bits)))        # exact for 0.5, 0.25
        shift = i * field_bits
        f = mask_bits if shift == 0 else (mask_bits >> shift)
        keep = (f & field_mask) < thr                          # Bernoulli(keep_prob)
        adjt = jnp.where(keep, adjt, 0.0)                      # single select, f32

        # Fused: [emb_last; num_last; ones] @ adjT -> prop(emb), prop(num),
        # rowsum(adj) in a single f32 MXU pass via the aligned scratch LHS.
        lhs_ref[0:d, :] = emb_last
        lhs_ref[d:d + 1, :] = num_last
        res = jnp.dot(lhs_ref[...], adjt, preferred_element_type=jnp.float32)

        new_emb = res[0:d] - (1.0 + order) * emb_last
        new_num = res[d:d + 1] - num_last - order
        order = res[d + 1:d + 2]        # rowsum of the freshly dropped adjacency
        emb_sum = emb_sum + new_emb
        num_sum = num_sum + new_num
        emb_last = new_emb
        num_last = new_num

    # ---- scoring epilogue (all lane-dense) -----------------------------------
    sub = emb_sum * (1.0 / (num_sum + 1e-8))                   # (D, N)
    ss_sub = jnp.sum(sub * sub, axis=0, keepdims=True)         # (1, N)
    dp = jnp.sum(sub * embt, axis=0, keepdims=True)            # (1, N)
    # F.normalize(x, p=2, eps=1e-12) on both factors folded into the cosine:
    scores = (dp * lax.rsqrt(jnp.maximum(ss_sub, 1e-24))
                 * lax.rsqrt(jnp.maximum(ss_emb, 1e-24)))

    # make_noise(): Gumbel(0,1) from the spare row of the precomputed bits.
    g = bits_ref[n:n + 1, :]
    u = ((g & 0x00FFFFFF).astype(jnp.float32) + 0.5) * (1.0 / (1 << 24))
    scores_ref[...] = scores - jnp.log(-jnp.log(u))


def local_graph_forward(adj, embeds, key):
    """Full LocalGraph.forward: returns (scores, candidates)."""
    n, d = embeds.shape

    # One threefry dispatch supplies ALL randomness (dropout fields + Gumbel).
    # TODO(synk): in-kernel pltpu.prng_* would remove this dispatch but has no
    # interpret/CPU lowering, so the bits are precomputed here.
    raw = jax.random.bits(key, (n + 1, n), dtype=jnp.uint32)
    rand_bits = (raw >> 1).astype(jnp.int32)        # clear sign bit -> 31 usable bits

    embt = embeds.astype(jnp.float32).T             # (D, N); tiny wrapper transpose

    kernel = functools.partial(local_graph_kernel, depth=MASK_DEPTH,
                               path_prob=PATH_PROB, field_bits=FIELD_BITS)
    scores = pl.pallas_call(
        kernel,
        out_shape=jax.ShapeDtypeStruct((1, n), jnp.float32),
        in_specs=[
            pl.BlockSpec(memory_space=pltpu.MemorySpace.VMEM),   # adj
            pl.BlockSpec(memory_space=pltpu.MemorySpace.VMEM),   # emb^T
            pl.BlockSpec(memory_space=pltpu.MemorySpace.VMEM),   # random bits
        ],
        out_specs=pl.BlockSpec(memory_space=pltpu.MemorySpace.VMEM),
        scratch_shapes=[pltpu.VMEM((d + 8, n), jnp.float32)],    # fused-matmul LHS
    )(adj.astype(jnp.float32), embt, rand_bits)

    scores = scores[0]                                           # (N,)
    # TODO(synk): top-k has no clean Pallas TPU primitive; done in JAX glue.
    _, candidates = jax.lax.top_k(scores, NUM_MASK_CAND)
    return scores, candidates


local_graph_forward = jax.jit(local_graph_forward)


if __name__ == "__main__":
    key = jax.random.PRNGKey(0)
    k_adj, k_emb, k_fwd = jax.random.split(key, 3)

    # Random sparse-ish adjacency (binary, ~20% density), dense f32 layout.
    adj = (jax.random.uniform(k_adj, (N, N)) < 0.2).astype(jnp.float32)
    embeds = jax.random.normal(k_emb, (N, D), dtype=jnp.float32)

    scores, candidates = local_graph_forward(adj, embeds, k_fwd)
    jax.block_until_ready((scores, candidates))

    assert scores.shape == (N,)
    assert candidates.shape == (NUM_MASK_CAND,)
    assert bool(jnp.all(jnp.isfinite(scores)))
    print("KERNEL_OK")
</pallas_src>

<mosaic_0001>
module attributes {stable_mosaic.version = 11 : i64} {
  func.func @local_graph_kernel(%arg0: memref<128x128xf32, #tpu.memory_space<vmem>>, %arg1: memref<32x128xf32, #tpu.memory_space<vmem>>, %arg2: memref<129x128xi32, #tpu.memory_space<vmem>>, %arg3: memref<1x128xf32, #tpu.memory_space<vmem>>, %arg4: memref<40x128xf32, #tpu.memory_space<vmem>>) attributes {dimension_semantics = [], scalar_prefetch = 0 : i64, scratch_operands = 1 : i64, tpu.core_type = #tpu.core_type<tc>} {
    %c0 = arith.constant 0 : index
    %c0_0 = arith.constant 0 : index
    %0 = vector.load %arg1[%c0, %c0_0] : memref<32x128xf32, #tpu.memory_space<vmem>>, vector<32x128xf32>
    %1 = arith.mulf %0, %0 : vector<32x128xf32>
    %cst = arith.constant dense<0.000000e+00> : vector<128xf32>
    %2 = vector.multi_reduction <add>, %1, %cst [0] : vector<32x128xf32> to vector<128xf32>
    %3 = vector.shape_cast %2 : vector<128xf32> to vector<1x128xf32>
    %c0_1 = arith.constant 0 : index
    %c0_2 = arith.constant 0 : index
    %4 = vector.load %arg0[%c0_1, %c0_2] : memref<128x128xf32, #tpu.memory_space<vmem>>, vector<128x128xf32>
    %5 = tpu.transpose %4, [1, 0] : vector<128x128xf32> -> vector<128x128xf32>
    %c0_3 = arith.constant 0 : index
    %c0_4 = arith.constant 0 : index
    %6 = vector.load %arg2[%c0_3, %c0_4] : memref<129x128xi32, #tpu.memory_space<vmem>>, vector<128x128xi32>
    %cst_5 = arith.constant 1.000000e+00 : f32
    %7 = vector.broadcast %cst_5 : f32 to vector<1x128xf32>
    %cst_6 = arith.constant 0.000000e+00 : f32
    %8 = vector.broadcast %cst_6 : f32 to vector<40x128xf32>
    %c0_7 = arith.constant 0 : index
    %c0_8 = arith.constant 0 : index
    %9 = vector.load %arg4[%c0_7, %c0_8] : memref<40x128xf32, #tpu.memory_space<vmem>>, vector<40x128xf32>
    tpu.vector_store %arg4[%c0_7, %c0_8], %8 {strides = array<i32>} : memref<40x128xf32, #tpu.memory_space<vmem>>, vector<40x128xf32>,
    %c0_9 = arith.constant 0 : index
    %c0_10 = arith.constant 0 : index
    %10 = vector.load %arg4[%c0_9, %c0_10] : memref<40x128xf32, #tpu.memory_space<vmem>>, vector<32x128xf32>
    tpu.vector_store %arg4[%c0_9, %c0_10], %0 {strides = array<i32>} : memref<40x128xf32, #tpu.memory_space<vmem>>, vector<32x128xf32>,
    %c33 = arith.constant 33 : index
    %c0_11 = arith.constant 0 : index
    %11 = vector.load %arg4[%c33, %c0_11] : memref<40x128xf32, #tpu.memory_space<vmem>>, vector<1x128xf32>
    tpu.vector_store %arg4[%c33, %c0_11], %7 {strides = array<i32>} : memref<40x128xf32, #tpu.memory_space<vmem>>, vector<1x128xf32>,
    %c0_12 = arith.constant 0 : index
    %c0_13 = arith.constant 0 : index
    %12 = vector.load %arg4[%c0_12, %c0_13] : memref<40x128xf32, #tpu.memory_space<vmem>>, vector<40x128xf32>
    %cst_14 = arith.constant dense<0.000000e+00> : vector<40x128xf32>
    %13 = tpu.matmul %12, %5, %cst_14 {dimension_numbers = #tpu.dot_dimension_numbers<[1], [0], [0], [1], [0, 0, 1, 1], [], []>} : vector<40x128xf32>, vector<128x128xf32>, vector<40x128xf32> -> vector<40x128xf32>
    %14 = vector.extract_strided_slice %13 {offsets = [33, 0], sizes = [1, 128], strides = [1, 1]} : vector<40x128xf32> to vector<1x128xf32>
    %15 = vector.extract_strided_slice %13 {offsets = [0, 0], sizes = [32, 128], strides = [1, 1]} : vector<40x128xf32> to vector<32x128xf32>
    %16 = arith.subf %15, %0 : vector<32x128xf32>
    %c32767_i32 = arith.constant 32767 : i32
    %17 = vector.broadcast %c32767_i32 : i32 to vector<128x128xi32>
    %18 = arith.andi %6, %17 : vector<128x128xi32>
    %c16384_i32 = arith.constant 16384 : i32
    %19 = vector.broadcast %c16384_i32 : i32 to vector<128x128xi32>
    %20 = arith.cmpi slt, %18, %19 : vector<128x128xi32>
    %cst_15 = arith.constant 0.000000e+00 : f32
    %21 = vector.broadcast %cst_15 : f32 to vector<128x128xf32>
    %22 = arith.select %20, %5, %21 : vector<128x128xi1>, vector<128x128xf32>
    %c0_16 = arith.constant 0 : index
    %c0_17 = arith.constant 0 : index
    %23 = vector.load %arg4[%c0_16, %c0_17] : memref<40x128xf32, #tpu.memory_space<vmem>>, vector<32x128xf32>
    tpu.vector_store %arg4[%c0_16, %c0_17], %16 {strides = array<i32>} : memref<40x128xf32, #tpu.memory_space<vmem>>, vector<32x128xf32>,
    %c32 = arith.constant 32 : index
    %c0_18 = arith.constant 0 : index
    %24 = vector.load %arg4[%c32, %c0_18] : memref<40x128xf32, #tpu.memory_space<vmem>>, vector<1x128xf32>
    tpu.vector_store %arg4[%c32, %c0_18], %14 {strides = array<i32>} : memref<40x128xf32, #tpu.memory_space<vmem>>, vector<1x128xf32>,
    %c0_19 = arith.constant 0 : index
    %c0_20 = arith.constant 0 : index
    %25 = vector.load %arg4[%c0_19, %c0_20] : memref<40x128xf32, #tpu.memory_space<vmem>>, vector<40x128xf32>
    %cst_21 = arith.constant dense<0.000000e+00> : vector<40x128xf32>
    %26 = tpu.matmul %25, %22, %cst_21 {dimension_numbers = #tpu.dot_dimension_numbers<[1], [0], [0], [1], [0, 0, 1, 1], [], []>} : vector<40x128xf32>, vector<128x128xf32>, vector<40x128xf32> -> vector<40x128xf32>
    %27 = vector.extract_strided_slice %26 {offsets = [0, 0], sizes = [32, 128], strides = [1, 1]} : vector<40x128xf32> to vector<32x128xf32>
    %cst_22 = arith.constant 1.000000e+00 : f32
    %28 = vector.broadcast %cst_22 : f32 to vector<1x128xf32>
    %29 = arith.addf %28, %14 : vector<1x128xf32>
    %30 = vector.broadcast %29 : vector<1x128xf32> to vector<32x128xf32>
    %31 = arith.mulf %30, %16 : vector<32x128xf32>
    %32 = arith.subf %27, %31 : vector<32x128xf32>
    %33 = vector.extract_strided_slice %26 {offsets = [32, 0], sizes = [1, 128], strides = [1, 1]} : vector<40x128xf32> to vector<1x128xf32>
    %34 = arith.subf %33, %14 : vector<1x128xf32>
    %35 = arith.subf %34, %14 : vector<1x128xf32>
    %36 = vector.extract_strided_slice %26 {offsets = [33, 0], sizes = [1, 128], strides = [1, 1]} : vector<40x128xf32> to vector<1x128xf32>
    %37 = arith.addf %16, %32 : vector<32x128xf32>
    %38 = arith.addf %14, %35 : vector<1x128xf32>
    %c15_i32 = arith.constant 15 : i32
    %39 = vector.broadcast %c15_i32 : i32 to vector<128x128xi32>
    %40 = arith.shrsi %6, %39 : vector<128x128xi32>
    %c32767_i32_23 = arith.constant 32767 : i32
    %41 = vector.broadcast %c32767_i32_23 : i32 to vector<128x128xi32>
    %42 = arith.andi %40, %41 : vector<128x128xi32>
    %c8192_i32 = arith.constant 8192 : i32
    %43 = vector.broadcast %c8192_i32 : i32 to vector<128x128xi32>
    %44 = arith.cmpi slt, %42, %43 : vector<128x128xi32>
    %cst_24 = arith.constant 0.000000e+00 : f32
    %45 = vector.broadcast %cst_24 : f32 to vector<128x128xf32>
    %46 = arith.select %44, %22, %45 : vector<128x128xi1>, vector<128x128xf32>
    %c0_25 = arith.constant 0 : index
    %c0_26 = arith.constant 0 : index
    %47 = vector.load %arg4[%c0_25, %c0_26] : memref<40x128xf32, #tpu.memory_space<vmem>>, vector<32x128xf32>
    tpu.vector_store %arg4[%c0_25, %c0_26], %32 {strides = array<i32>} : memref<40x128xf32, #tpu.memory_space<vmem>>, vector<32x128xf32>,
    %c32_27 = arith.constant 32 : index
    %c0_28 = arith.constant 0 : index
    %48 = vector.load %arg4[%c32_27, %c0_28] : memref<40x128xf32, #tpu.memory_space<vmem>>, vector<1x128xf32>
    tpu.vector_store %arg4[%c32_27, %c0_28], %35 {strides = array<i32>} : memref<40x128xf32, #tpu.memory_space<vmem>>, vector<1x128xf32>,
    %c0_29 = arith.constant 0 : index
    %c0_30 = arith.constant 0 : index
    %49 = vector.load %arg4[%c0_29, %c0_30] : memref<40x128xf32, #tpu.memory_space<vmem>>, vector<40x128xf32>
    %cst_31 = arith.constant dense<0.000000e+00> : vector<40x128xf32>
    %50 = tpu.matmul %49, %46, %cst_31 {dimension_numbers = #tpu.dot_dimension_numbers<[1], [0], [0], [1], [0, 0, 1, 1], [], []>} : vector<40x128xf32>, vector<128x128xf32>, vector<40x128xf32> -> vector<40x128xf32>
    %51 = vector.extract_strided_slice %50 {offsets = [0, 0], sizes = [32, 128], strides = [1, 1]} : vector<40x128xf32> to vector<32x128xf32>
    %cst_32 = arith.constant 1.000000e+00 : f32
    %52 = vector.broadcast %cst_32 : f32 to vector<1x128xf32>
    %53 = arith.addf %52, %36 : vector<1x128xf32>
    %54 = vector.broadcast %53 : vector<1x128xf32> to vector<32x128xf32>
    %55 = arith.mulf %54, %32 : vector<32x128xf32>
    %56 = arith.subf %51, %55 : vector<32x128xf32>
    %57 = vector.extract_strided_slice %50 {offsets = [32, 0], sizes = [1, 128], strides = [1, 1]} : vector<40x128xf32> to vector<1x128xf32>
    %58 = arith.subf %57, %35 : vector<1x128xf32>
    %59 = arith.subf %58, %36 : vector<1x128xf32>
    %60 = arith.addf %37, %56 : vector<32x128xf32>
    %61 = arith.addf %38, %59 : vector<1x128xf32>
    %cst_33 = arith.constant 9.99999993E-9 : f32
    %62 = vector.broadcast %cst_33 : f32 to vector<1x128xf32>
    %63 = arith.addf %61, %62 : vector<1x128xf32>
    %cst_34 = arith.constant 1.000000e+00 : f32
    %64 = vector.broadcast %cst_34 : f32 to vector<1x128xf32>
    %65 = arith.divf %64, %63 : vector<1x128xf32>
    %66 = vector.broadcast %65 : vector<1x128xf32> to vector<32x128xf32>
    %67 = arith.mulf %60, %66 : vector<32x128xf32>
    %68 = arith.mulf %67, %67 : vector<32x128xf32>
    %cst_35 = arith.constant dense<0.000000e+00> : vector<128xf32>
    %69 = vector.multi_reduction <add>, %68, %cst_35 [0] : vector<32x128xf32> to vector<128xf32>
    %70 = vector.shape_cast %69 : vector<128xf32> to vector<1x128xf32>
    %71 = arith.mulf %67, %0 : vector<32x128xf32>
    %cst_36 = arith.constant dense<0.000000e+00> : vector<128xf32>
    %72 = vector.multi_reduction <add>, %71, %cst_36 [0] : vector<32x128xf32> to vector<128xf32>
    %73 = vector.shape_cast %72 : vector<128xf32> to vector<1x128xf32>
    %cst_37 = arith.constant 1.000000e-24 : f32
    %74 = vector.broadcast %cst_37 : f32 to vector<1x128xf32>
    %75 = arith.maximumf %70, %74 : vector<1x128xf32>
    %76 = math.rsqrt %75 : vector<1x128xf32>
    %77 = arith.mulf %73, %76 : vector<1x128xf32>
    %cst_38 = arith.constant 1.000000e-24 : f32
    %78 = vector.broadcast %cst_38 : f32 to vector<1x128xf32>
    %79 = arith.maximumf %3, %78 : vector<1x128xf32>
    %80 = math.rsqrt %79 : vector<1x128xf32>
    %81 = arith.mulf %77, %80 : vector<1x128xf32>
    %c128 = arith.constant 128 : index
    %c0_39 = arith.constant 0 : index
    %82 = vector.load %arg2[%c128, %c0_39] : memref<129x128xi32, #tpu.memory_space<vmem>>, vector<1x128xi32>
    %c16777215_i32 = arith.constant 16777215 : i32
    %83 = vector.broadcast %c16777215_i32 : i32 to vector<1x128xi32>
    %84 = arith.andi %82, %83 : vector<1x128xi32>
    %85 = arith.sitofp %84 : vector<1x128xi32> to vector<1x128xf32>
    %cst_40 = arith.constant 5.000000e-01 : f32
    %86 = vector.broadcast %cst_40 : f32 to vector<1x128xf32>
    %87 = arith.addf %85, %86 : vector<1x128xf32>
    %cst_41 = arith.constant 5.96046448E-8 : f32
    %88 = vector.broadcast %cst_41 : f32 to vector<1x128xf32>
    %89 = arith.mulf %87, %88 : vector<1x128xf32>
    %90 = math.log %89 : vector<1x128xf32>
    %cst_42 = arith.constant 0.000000e+00 : f32
    %91 = vector.broadcast %cst_42 : f32 to vector<1x128xf32>
    %92 = arith.subf %91, %90 : vector<1x128xf32>
    %93 = math.log %92 : vector<1x128xf32>
    %94 = arith.subf %81, %93 : vector<1x128xf32>
    %c0_43 = arith.constant 0 : index
    %c0_44 = arith.constant 0 : index
    %95 = vector.load %arg3[%c0_43, %c0_44] : memref<1x128xf32, #tpu.memory_space<vmem>>, vector<1x128xf32>
    tpu.vector_store %arg3[%c0_43, %c0_44], %94 {strides = array<i32>} : memref<1x128xf32, #tpu.memory_space<vmem>>, vector<1x128xf32>,
    return
  }
}

</mosaic_0001>

<llo_original>
// kernel: local_graph_forward.1
$region0: #{local_graph_forward.1}
  #allocation0 [shape = 'u32[]', space=smem, size = 0x4, offset = 0x4, fixed_abs, tag = 'smem constant byte address 0x4 - core index']
  #allocation1 [shape = 'u32[144,128]{1,0:T(1,128)}', space=vmem, size = 0x12000, scoped, tag = 'internal scratch']
  #allocation2 [shape = 'f32[40,128]{1,0:T(8,128)}', space=vmem, size = 0x5000, scoped, tag = 'scratch operand']
  %s0 = inlined_call_operand.vmem [shape: f32[128,128], index: 0, kind: input, shape index: {}]
  %s1 = inlined_call_operand.vmem [shape: f32[32,128], index: 1, kind: input, shape index: {}]
  %s2 = inlined_call_operand.vmem [shape: s32[129,128], index: 2, kind: input, shape index: {}]
  %s3 = inlined_call_operand.vmem [shape: f32[1,128], index: 3, kind: output, shape index: {}]
  %s4 = sld [smem:[#allocation0]]
  $region22: #{local_graph_forward.1} parent=0
    _
  %s6 = ssub.s32 1, %s4
  %s7 = scalar_select 0, %s6, %s4
  // Predicated region
  $region2: #{local_graph_forward.1} parent=0 // pred_check
    _
  $region3: #{local_graph_forward.1} parent=0 // pred_check_branch
    %9 = sbr.rel (0) target = $region5
  $region4: #{local_graph_forward.1} parent=0 // pred_region
    _
  $region5: #{local_graph_forward.1} parent=0 // pred_fallthru
    _
  // Predicated region
  $region6: #{local_graph_forward.1} parent=0 // pred_check
    _
  $region7: #{local_graph_forward.1} parent=0 // pred_check_branch
    %11 = sbr.rel (0) target = $region9
  $region8: #{local_graph_forward.1} parent=0 // pred_region
    _
  $region9: #{local_graph_forward.1} parent=0 // pred_fallthru
    _
  // Predicated region
  $region10: #{local_graph_forward.1} parent=0 // pred_check
    _
  $region11: #{local_graph_forward.1} parent=0 // pred_check_branch
    %13 = sbr.rel (0) target = $region13
  $region12: #{local_graph_forward.1} parent=0 // pred_region
    _
  $region13: #{local_graph_forward.1} parent=0 // pred_fallthru
    _
  %v14 = vld [vmem:[%s1] sm:$0xff]
  %v15 = vld [vmem:[%s1 + $0x8] sm:$0xff]
  %v16 = vld [vmem:[%s1 + $0x10] sm:$0xff]
  %v17 = vld [vmem:[%s1 + $0x18] sm:$0xff]
  %v18 = vmul.f32 %v14, %v14
  %v19 = vmul.f32 %v15, %v15
  %v20 = vmul.f32 %v16, %v16
  %v21 = vmul.f32 %v17, %v17
  %v22 = vadd.f32 %v18, %v19
  %v23 = vadd.f32 %v22, %v20
  %v24 = vadd.f32 %v23, %v21
  %v25 = vrot.slane %v24, 4
  %v26 = vadd.f32 %v24, %v25
  %v27 = vrot.slane %v26, 2
  %v28 = vadd.f32 %v26, %v27
  %v29 = vrot.slane %v28, 1
  %v30 = vadd.f32 %v28, %v29
  %v31 = vld [vmem:[%s0] sm:$0xff]
  %v32 = vld [vmem:[%s0 + $0x8] sm:$0xff]
  %v33 = vld [vmem:[%s0 + $0x10] sm:$0xff]
  %v34 = vld [vmem:[%s0 + $0x18] sm:$0xff]
  %v35 = vld [vmem:[%s0 + $0x20] sm:$0xff]
  %v36 = vld [vmem:[%s0 + $0x28] sm:$0xff]
  %v37 = vld [vmem:[%s0 + $0x30] sm:$0xff]
  %v38 = vld [vmem:[%s0 + $0x38] sm:$0xff]
  %v39 = vld [vmem:[%s0 + $0x40] sm:$0xff]
  %v40 = vld [vmem:[%s0 + $0x48] sm:$0xff]
  %v41 = vld [vmem:[%s0 + $0x50] sm:$0xff]
  %v42 = vld [vmem:[%s0 + $0x58] sm:$0xff]
  %v43 = vld [vmem:[%s0 + $0x60] sm:$0xff]
  %v44 = vld [vmem:[%s0 + $0x68] sm:$0xff]
  %v45 = vld [vmem:[%s0 + $0x70] sm:$0xff]
  %v46 = vld [vmem:[%s0 + $0x78] sm:$0xff]
  %47 = vxpose.xlu0.b32.start [1/16] %v31, 128
  %48 = vxpose.xlu0.b32.cont [2/16] %v32, 128
  %49 = vxpose.xlu0.b32.cont [3/16] %v33, 128
  %50 = vxpose.xlu0.b32.cont [4/16] %v34, 128
  %51 = vxpose.xlu0.b32.cont [5/16] %v35, 128
  %52 = vxpose.xlu0.b32.cont [6/16] %v36, 128
  %53 = vxpose.xlu0.b32.cont [7/16] %v37, 128
  %54 = vxpose.xlu0.b32.cont [8/16] %v38, 128
  %55 = vxpose.xlu0.b32.cont [9/16] %v39, 128
  %56 = vxpose.xlu0.b32.cont [10/16] %v40, 128
  %57 = vxpose.xlu0.b32.cont [11/16] %v41, 128
  %58 = vxpose.xlu0.b32.cont [12/16] %v42, 128
  %59 = vxpose.xlu0.b32.cont [13/16] %v43, 128
  %60 = vxpose.xlu0.b32.cont [14/16] %v44, 128
  %61 = vxpose.xlu0.b32.cont [15/16] %v45, 128
  %62 = vxpose.xlu0.b32.end [16/16] %v46, 128
  %v63 = vpop.trf.xlu0
  %v64 = vpop.trf.xlu0
  %v65 = vpop.trf.xlu0
  %v66 = vpop.trf.xlu0
  %v67 = vpop.trf.xlu0
  %v68 = vpop.trf.xlu0
  %v69 = vpop.trf.xlu0
  %v70 = vpop.trf.xlu0
  %v71 = vpop.trf.xlu0
  %v72 = vpop.trf.xlu0
  %v73 = vpop.trf.xlu0
  %v74 = vpop.trf.xlu0
  %v75 = vpop.trf.xlu0
  %v76 = vpop.trf.xlu0
  %v77 = vpop.trf.xlu0
  %v78 = vpop.trf.xlu0
  %v79 = vld [vmem:[%s2] sm:$0xff]
  %v80 = vld [vmem:[%s2 + $0x8] sm:$0xff]
  %v81 = vld [vmem:[%s2 + $0x10] sm:$0xff]
  %v82 = vld [vmem:[%s2 + $0x18] sm:$0xff]
  %v83 = vld [vmem:[%s2 + $0x20] sm:$0xff]
  %v84 = vld [vmem:[%s2 + $0x28] sm:$0xff]
  %v85 = vld [vmem:[%s2 + $0x30] sm:$0xff]
  %v86 = vld [vmem:[%s2 + $0x38] sm:$0xff]
  %v87 = vld [vmem:[%s2 + $0x40] sm:$0xff]
  %v88 = vld [vmem:[%s2 + $0x48] sm:$0xff]
  %v89 = vld [vmem:[%s2 + $0x50] sm:$0xff]
  %v90 = vld [vmem:[%s2 + $0x58] sm:$0xff]
  %v91 = vld [vmem:[%s2 + $0x60] sm:$0xff]
  %v92 = vld [vmem:[%s2 + $0x68] sm:$0xff]
  %v93 = vld [vmem:[%s2 + $0x70] sm:$0xff]
  %v94 = vld [vmem:[%s2 + $0x78] sm:$0xff]
  %95 = vst [vmem:[#allocation2] sm:$0xff] 0.0
  %96 = vst [vmem:[#allocation2 + $0x8] sm:$0xff] 0.0
  %97 = vst [vmem:[#allocation2 + $0x10] sm:$0xff] 0.0
  %98 = vst [vmem:[#allocation2 + $0x18] sm:$0xff] 0.0
  %99 = vst [vmem:[#allocation2 + $0x20] sm:$0xff] 0.0
  %100 = vst [vmem:[#allocation2] sm:$0xff] %v14
  %101 = vst [vmem:[#allocation2 + $0x8] sm:$0xff] %v15
  %102 = vst [vmem:[#allocation2 + $0x10] sm:$0xff] %v16
  %103 = vst [vmem:[#allocation2 + $0x18] sm:$0xff] %v17
  %104 = vst [vmem:[#allocation2 + $0x21] sm:$0x1] 1.0
  %v105 = vld [vmem:[#allocation2] sm:$0xff]
  %v106 = vld [vmem:[#allocation2 + $0x8] sm:$0xff]
  %v107 = vld [vmem:[#allocation2 + $0x10] sm:$0xff]
  %v108 = vld [vmem:[#allocation2 + $0x18] sm:$0xff]
  %v109 = vld [vmem:[#allocation2 + $0x20] sm:$0xff]
  %110 = vmatprep.subr.mxu0 0.0
  %111 = vmatpush1.msra.mxu0 %v63
  %112 = vmatprep.subr.mxu0 0.0
  %113 = vmatpush1.msra.mxu0 %v64
  %114 = vmatprep.subr.mxu0 0.0
  %115 = vmatpush1.msra.mxu0 %v65
  %116 = vmatprep.subr.mxu0 0.0
  %117 = vmatpush1.msra.mxu0 %v66
  %118 = vmatprep.subr.mxu0 0.0
  %119 = vmatpush1.msra.mxu0 %v67
  %120 = vmatprep.subr.mxu0 0.0
  %121 = vmatpush1.msra.mxu0 %v68
  %122 = vmatprep.subr.mxu0 0.0
  %123 = vmatpush1.msra.mxu0 %v69
  %124 = vmatprep.subr.mxu0 0.0
  %125 = vmatpush1.msra.mxu0 %v70
  %126 = vmatprep.subr.mxu0 0.0
  %127 = vmatpush1.msra.mxu0 %v71
  %128 = vmatprep.subr.mxu0 0.0
  %129 = vmatpush1.msra.mxu0 %v72
  %130 = vmatprep.subr.mxu0 0.0
  %131 = vmatpush1.msra.mxu0 %v73
  %132 = vmatprep.subr.mxu0 0.0
  %133 = vmatpush1.msra.mxu0 %v74
  %134 = vmatprep.subr.mxu0 0.0
  %135 = vmatpush1.msra.mxu0 %v75
  %136 = vmatprep.subr.mxu0 0.0
  %137 = vmatpush1.msra.mxu0 %v76
  %138 = vmatprep.subr.mxu0 0.0
  %139 = vmatpush1.msra.mxu0 %v77
  %140 = vmatprep.subr.mxu0 0.0
  %141 = vmatpush1.msra.mxu0 %v78
  %142 = vmatprep.subr.mxu0 0.0
  %143 = vmatpush1.msra.mxu0 0.0
  %144 = vmatprep.subr.mxu0 0.0
  %145 = vmatpush1.msra.mxu0 0.0
  %146 = vmatprep.subr.mxu0 0.0
  %147 = vmatpush1.msra.mxu0 0.0
  %148 = vmatprep.subr.mxu0 0.0
  %149 = vmatpush1.msra.mxu0 0.0
  %150 = vmatprep.subr.mxu0 0.0
  %151 = vmatpush1.msra.mxu0 0.0
  %152 = vmatprep.subr.mxu0 0.0
  %153 = vmatpush1.msra.mxu0 0.0
  %154 = vmatprep.subr.mxu0 0.0
  %155 = vmatpush1.msra.mxu0 0.0
  %156 = vmatprep.subr.mxu0 0.0
  %157 = vmatpush1.msra.mxu0 0.0
  %158 = vmatprep.subr.mxu0 0.0
  %159 = vmatpush1.msra.mxu0 0.0
  %160 = vmatprep.subr.mxu0 0.0
  %161 = vmatpush1.msra.mxu0 0.0
  %162 = vmatprep.subr.mxu0 0.0
  %163 = vmatpush1.msra.mxu0 0.0
  %164 = vmatprep.subr.mxu0 0.0
  %165 = vmatpush1.msra.mxu0 0.0
  %166 = vmatprep.subr.mxu0 0.0
  %167 = vmatpush1.msra.mxu0 0.0
  %168 = vmatprep.subr.mxu0 0.0
  %169 = vmatpush1.msra.mxu0 0.0
  %170 = vmatprep.subr.mxu0 0.0
  %171 = vmatpush1.msra.mxu0 0.0
  %172 = vmatprep.subr.mxu0 0.0
  %173 = vmatpush1.msra.mxu0 0.0
  %174 = vmatprep.mubr.f32.mxu0 0.0
  %175 = vmatmul.mubr.f32.gmra.mrb[0].mxu0 %v105
  %v176 = vpop.f32.mrb[0].mxu0
  %v177 = vadd.f32 0.0, %v176
  %v178 = vpop.f32.mrb[0].mxu0
  %179 = vmatprep.mubr.f32.mxu0 0.0
  %180 = vmatmul.mubr.f32.gmra.mrb[0].mxu0 %v106
  %v181 = vpop.f32.mrb[0].mxu0
  %v182 = vadd.f32 0.0, %v181
  %v183 = vpop.f32.mrb[0].mxu0
  %184 = vmatprep.mubr.f32.mxu0 0.0
  %185 = vmatmul.mubr.f32.gmra.mrb[0].mxu0 %v107
  %v186 = vpop.f32.mrb[0].mxu0
  %v187 = vadd.f32 0.0, %v186
  %v188 = vpop.f32.mrb[0].mxu0
  %189 = vmatprep.mubr.f32.mxu0 0.0
  %190 = vmatmul.mubr.f32.gmra.mrb[0].mxu0 %v108
  %v191 = vpop.f32.mrb[0].mxu0
  %v192 = vadd.f32 0.0, %v191
  %v193 = vpop.f32.mrb[0].mxu0
  %194 = vmatprep.mubr.f32.mxu0 0.0
  %195 = vmatmul.mubr.f32.gmra.mrb[0].mxu0 %v109
  %v196 = vpop.f32.mrb[0].mxu0
  %v197 = vadd.f32 0.0, %v196
  %v198 = vpop.f32.mrb[0].mxu0
  %199 = vdwg.mxu0
  %v200 = vsub.f32 %v177, %v14
  %v201 = vsub.f32 %v182, %v15
  %v202 = vsub.f32 %v187, %v16
  %v203 = vsub.f32 %v192, %v17
  %v204 = vand.u32 %v79, 32767
  %v205 = vand.u32 %v80, 32767
  %v206 = vand.u32 %v81, 32767
  %v207 = vand.u32 %v82, 32767
  %v208 = vand.u32 %v83, 32767
  %v209 = vand.u32 %v84, 32767
  %v210 = vand.u32 %v85, 32767
  %v211 = vand.u32 %v86, 32767
  %v212 = vand.u32 %v87, 32767
  %v213 = vand.u32 %v88, 32767
  %v214 = vand.u32 %v89, 32767
  %v215 = vand.u32 %v90, 32767
  %v216 = vand.u32 %v91, 32767
  %v217 = vand.u32 %v92, 32767
  %v218 = vand.u32 %v93, 32767
  %v219 = vand.u32 %v94, 32767
  %vm220 = vcmp.lt.s32.totalorder %v204, 16384
  %vm221 = vcmp.lt.s32.totalorder %v205, 16384
  %vm222 = vcmp.lt.s32.totalorder %v206, 16384
  %vm223 = vcmp.lt.s32.totalorder %v207, 16384
  %vm224 = vcmp.lt.s32.totalorder %v208, 16384
  %vm225 = vcmp.lt.s32.totalorder %v209, 16384
  %vm226 = vcmp.lt.s32.totalorder %v210, 16384
  %vm227 = vcmp.lt.s32.totalorder %v211, 16384
  %vm228 = vcmp.lt.s32.totalorder %v212, 16384
  %vm229 = vcmp.lt.s32.totalorder %v213, 16384
  %vm230 = vcmp.lt.s32.totalorder %v214, 16384
  %vm231 = vcmp.lt.s32.totalorder %v215, 16384
  %vm232 = vcmp.lt.s32.totalorder %v216, 16384
  %vm233 = vcmp.lt.s32.totalorder %v217, 16384
  %vm234 = vcmp.lt.s32.totalorder %v218, 16384
  %vm235 = vcmp.lt.s32.totalorder %v219, 16384
  %v236 = vsel %vm220, %v63, 0.0
  %v237 = vsel %vm221, %v64, 0.0
  %v238 = vsel %vm222, %v65, 0.0
  %v239 = vsel %vm223, %v66, 0.0
  %v240 = vsel %vm224, %v67, 0.0
  %v241 = vsel %vm225, %v68, 0.0
  %v242 = vsel %vm226, %v69, 0.0
  %v243 = vsel %vm227, %v70, 0.0
  %v244 = vsel %vm228, %v71, 0.0
  %v245 = vsel %vm229, %v72, 0.0
  %v246 = vsel %vm230, %v73, 0.0
  %v247 = vsel %vm231, %v74, 0.0
  %v248 = vsel %vm232, %v75, 0.0
  %v249 = vsel %vm233, %v76, 0.0
  %v250 = vsel %vm234, %v77, 0.0
  %v251 = vsel %vm235, %v78, 0.0
  %252 = vst [vmem:[#allocation2] sm:$0xff] %v200
  %253 = vst [vmem:[#allocation2 + $0x8] sm:$0xff] %v201
  %254 = vst [vmem:[#allocation2 + $0x10] sm:$0xff] %v202
  %255 = vst [vmem:[#allocation2 + $0x18] sm:$0xff] %v203
  %256 = vst [vmem:[#allocation2 + $0x1f] sm:$0x2] %v197
  %v257 = vld [vmem:[#allocation2] sm:$0xff]
  %v258 = vld [vmem:[#allocation2 + $0x8] sm:$0xff]
  %v259 = vld [vmem:[#allocation2 + $0x10] sm:$0xff]
  %v260 = vld [vmem:[#allocation2 + $0x18] sm:$0xff]
  %v261 = vld [vmem:[#allocation2 + $0x20] sm:$0xff]
  %262 = vmatprep.subr.mxu0 0.0
  %263 = vmatpush1.msra.mxu0 %v236
  %264 = vmatprep.subr.mxu0 0.0
  %265 = vmatpush1.msra.mxu0 %v237
  %266 = vmatprep.subr.mxu0 0.0
  %267 = vmatpush1.msra.mxu0 %v238
  %268 = vmatprep.subr.mxu0 0.0
  %269 = vmatpush1.msra.mxu0 %v239
  %270 = vmatprep.subr.mxu0 0.0
  %271 = vmatpush1.msra.mxu0 %v240
  %272 = vmatprep.subr.mxu0 0.0
  %273 = vmatpush1.msra.mxu0 %v241
  %274 = vmatprep.subr.mxu0 0.0
  %275 = vmatpush1.msra.mxu0 %v242
  %276 = vmatprep.subr.mxu0 0.0
  %277 = vmatpush1.msra.mxu0 %v243
  %278 = vmatprep.subr.mxu0 0.0
  %279 = vmatpush1.msra.mxu0 %v244
  %280 = vmatprep.subr.mxu0 0.0
  %281 = vmatpush1.msra.mxu0 %v245
  %282 = vmatprep.subr.mxu0 0.0
  %283 = vmatpush1.msra.mxu0 %v246
  %284 = vmatprep.subr.mxu0 0.0
  %285 = vmatpush1.msra.mxu0 %v247
  %286 = vmatprep.subr.mxu0 0.0
  %287 = vmatpush1.msra.mxu0 %v248
  %288 = vmatprep.subr.mxu0 0.0
  %289 = vmatpush1.msra.mxu0 %v249
  %290 = vmatprep.subr.mxu0 0.0
  %291 = vmatpush1.msra.mxu0 %v250
  %292 = vmatprep.subr.mxu0 0.0
  %293 = vmatpush1.msra.mxu0 %v251
  %294 = vmatprep.subr.mxu0 0.0
  %295 = vmatpush1.msra.mxu0 0.0
  %296 = vmatprep.subr.mxu0 0.0
  %297 = vmatpush1.msra.mxu0 0.0
  %298 = vmatprep.subr.mxu0 0.0
  %299 = vmatpush1.msra.mxu0 0.0
  %300 = vmatprep.subr.mxu0 0.0
  %301 = vmatpush1.msra.mxu0 0.0
  %302 = vmatprep.subr.mxu0 0.0
  %303 = vmatpush1.msra.mxu0 0.0
  %304 = vmatprep.subr.mxu0 0.0
  %305 = vmatpush1.msra.mxu0 0.0
  %306 = vmatprep.subr.mxu0 0.0
  %307 = vmatpush1.msra.mxu0 0.0
  %308 = vmatprep.subr.mxu0 0.0
  %309 = vmatpush1.msra.mxu0 0.0
  %310 = vmatprep.subr.mxu0 0.0
  %311 = vmatpush1.msra.mxu0 0.0
  %312 = vmatprep.subr.mxu0 0.0
  %313 = vmatpush1.msra.mxu0 0.0
  %314 = vmatprep.subr.mxu0 0.0
  %315 = vmatpush1.msra.mxu0 0.0
  %316 = vmatprep.subr.mxu0 0.0
  %317 = vmatpush1.msra.mxu0 0.0
  %318 = vmatprep.subr.mxu0 0.0
  %319 = vmatpush1.msra.mxu0 0.0
  %320 = vmatprep.subr.mxu0 0.0
  %321 = vmatpush1.msra.mxu0 0.0
  %322 = vmatprep.subr.mxu0 0.0
  %323 = vmatpush1.msra.mxu0 0.0
  %324 = vmatprep.subr.mxu0 0.0
  %325 = vmatpush1.msra.mxu0 0.0
  %326 = vmatprep.mubr.f32.mxu0 0.0
  %327 = vmatmul.mubr.f32.gmra.mrb[0].mxu0 %v257
  %v328 = vpop.f32.mrb[0].mxu0
  %v329 = vadd.f32 0.0, %v328
  %v330 = vpop.f32.mrb[0].mxu0
  %331 = vmatprep.mubr.f32.mxu0 0.0
  %332 = vmatmul.mubr.f32.gmra.mrb[0].mxu0 %v258
  %v333 = vpop.f32.mrb[0].mxu0
  %v334 = vadd.f32 0.0, %v333
  %v335 = vpop.f32.mrb[0].mxu0
  %336 = vmatprep.mubr.f32.mxu0 0.0
  %337 = vmatmul.mubr.f32.gmra.mrb[0].mxu0 %v259
  %v338 = vpop.f32.mrb[0].mxu0
  %v339 = vadd.f32 0.0, %v338
  %v340 = vpop.f32.mrb[0].mxu0
  %341 = vmatprep.mubr.f32.mxu0 0.0
  %342 = vmatmul.mubr.f32.gmra.mrb[0].mxu0 %v260
  %v343 = vpop.f32.mrb[0].mxu0
  %v344 = vadd.f32 0.0, %v343
  %v345 = vpop.f32.mrb[0].mxu0
  %346 = vmatprep.mubr.f32.mxu0 0.0
  %347 = vmatmul.mubr.f32.gmra.mrb[0].mxu0 %v261
  %v348 = vpop.f32.mrb[0].mxu0
  %v349 = vadd.f32 0.0, %v348
  %v350 = vpop.f32.mrb[0].mxu0
  %351 = vdwg.mxu0
  %v352 = vadd.f32 %v197, 1.0
  %v353 = vlaneseq
  %v354 = vshrl.u32 %v353, 7
  %v355 = vsub.s32 1, %v354
  %v356 = vrot.slane %v352, %v355
  %v357 = vmul.f32 %v356, %v200
  %v358 = vmul.f32 %v356, %v201
  %v359 = vmul.f32 %v356, %v202
  %v360 = vmul.f32 %v356, %v203
  %v361 = vsub.f32 %v329, %v357
  %v362 = vsub.f32 %v334, %v358
  %v363 = vsub.f32 %v339, %v359
  %v364 = vsub.f32 %v344, %v360
  %v366 = vrot.slane %v197, 1
  %v368 = vsub.f32 %v349, %v366
  %v369 = vsub.f32 %v368, %v366
  %v370 = vadd.f32 %v200, %v361
  %v371 = vadd.f32 %v201, %v362
  %v372 = vadd.f32 %v202, %v363
  %v373 = vadd.f32 %v203, %v364
  %v375 = vrot.slane %v369, 7
  %v377 = vadd.f32 %v197, %v375
  %v378 = vshra.s32 %v79, 15
  %v379 = vshra.s32 %v80, 15
  %v380 = vshra.s32 %v81, 15
  %v381 = vshra.s32 %v82, 15
  %v382 = vshra.s32 %v83, 15
  %v383 = vshra.s32 %v84, 15
  %v384 = vshra.s32 %v85, 15
  %v385 = vshra.s32 %v86, 15
  %v386 = vshra.s32 %v87, 15
  %v387 = vshra.s32 %v88, 15
  %v388 = vshra.s32 %v89, 15
  %v389 = vshra.s32 %v90, 15
  %v390 = vshra.s32 %v91, 15
  %v391 = vshra.s32 %v92, 15
  %v392 = vshra.s32 %v93, 15
  %v393 = vshra.s32 %v94, 15
  %v394 = vand.u32 %v378, 32767
  %v395 = vand.u32 %v379, 32767
  %v396 = vand.u32 %v380, 32767
  %v397 = vand.u32 %v381, 32767
  %v398 = vand.u32 %v382, 32767
  %v399 = vand.u32 %v383, 32767
  %v400 = vand.u32 %v384, 32767
  %v401 = vand.u32 %v385, 32767
  %v402 = vand.u32 %v386, 32767
  %v403 = vand.u32 %v387, 32767
  %v404 = vand.u32 %v388, 32767
  %v405 = vand.u32 %v389, 32767
  %v406 = vand.u32 %v390, 32767
  %v407 = vand.u32 %v391, 32767
  %v408 = vand.u32 %v392, 32767
  %v409 = vand.u32 %v393, 32767
  %vm410 = vcmp.lt.s32.totalorder %v394, 8192
  %vm411 = vcmp.lt.s32.totalorder %v395, 8192
  %vm412 = vcmp.lt.s32.totalorder %v396, 8192
  %vm413 = vcmp.lt.s32.totalorder %v397, 8192
  %vm414 = vcmp.lt.s32.totalorder %v398, 8192
  %vm415 = vcmp.lt.s32.totalorder %v399, 8192
  %vm416 = vcmp.lt.s32.totalorder %v400, 8192
  %vm417 = vcmp.lt.s32.totalorder %v401, 8192
  %vm418 = vcmp.lt.s32.totalorder %v402, 8192
  %vm419 = vcmp.lt.s32.totalorder %v403, 8192
  %vm420 = vcmp.lt.s32.totalorder %v404, 8192
  %vm421 = vcmp.lt.s32.totalorder %v405, 8192
  %vm422 = vcmp.lt.s32.totalorder %v406, 8192
  %vm423 = vcmp.lt.s32.totalorder %v407, 8192
  %vm424 = vcmp.lt.s32.totalorder %v408, 8192
  %vm425 = vcmp.lt.s32.totalorder %v409, 8192
  %v426 = vsel %vm410, %v236, 0.0
  %v427 = vsel %vm411, %v237, 0.0
  %v428 = vsel %vm412, %v238, 0.0
  %v429 = vsel %vm413, %v239, 0.0
  %v430 = vsel %vm414, %v240, 0.0
  %v431 = vsel %vm415, %v241, 0.0
  %v432 = vsel %vm416, %v242, 0.0
  %v433 = vsel %vm417, %v243, 0.0
  %v434 = vsel %vm418, %v244, 0.0
  %v435 = vsel %vm419, %v245, 0.0
  %v436 = vsel %vm420, %v246, 0.0
  %v437 = vsel %vm421, %v247, 0.0
  %v438 = vsel %vm422, %v248, 0.0
  %v439 = vsel %vm423, %v249, 0.0
  %v440 = vsel %vm424, %v250, 0.0
  %v441 = vsel %vm425, %v251, 0.0
  %442 = vst [vmem:[#allocation2] sm:$0xff] %v361
  %443 = vst [vmem:[#allocation2 + $0x8] sm:$0xff] %v362
  %444 = vst [vmem:[#allocation2 + $0x10] sm:$0xff] %v363
  %445 = vst [vmem:[#allocation2 + $0x18] sm:$0xff] %v364
  %446 = vst [vmem:[#allocation2 + $0x20] sm:$0x1] %v369
  %v447 = vld [vmem:[#allocation2] sm:$0xff]
  %v448 = vld [vmem:[#allocation2 + $0x8] sm:$0xff]
  %v449 = vld [vmem:[#allocation2 + $0x10] sm:$0xff]
  %v450 = vld [vmem:[#allocation2 + $0x18] sm:$0xff]
  %v451 = vld [vmem:[#allocation2 + $0x20] sm:$0xff]
  %452 = vmatprep.subr.mxu0 0.0
  %453 = vmatpush1.msra.mxu0 %v426
  %454 = vmatprep.subr.mxu0 0.0
  %455 = vmatpush1.msra.mxu0 %v427
  %456 = vmatprep.subr.mxu0 0.0
  %457 = vmatpush1.msra.mxu0 %v428
  %458 = vmatprep.subr.mxu0 0.0
  %459 = vmatpush1.msra.mxu0 %v429
  %460 = vmatprep.subr.mxu0 0.0
  %461 = vmatpush1.msra.mxu0 %v430
  %462 = vmatprep.subr.mxu0 0.0
  %463 = vmatpush1.msra.mxu0 %v431
  %464 = vmatprep.subr.mxu0 0.0
  %465 = vmatpush1.msra.mxu0 %v432
  %466 = vmatprep.subr.mxu0 0.0
  %467 = vmatpush1.msra.mxu0 %v433
  %468 = vmatprep.subr.mxu0 0.0
  %469 = vmatpush1.msra.mxu0 %v434
  %470 = vmatprep.subr.mxu0 0.0
  %471 = vmatpush1.msra.mxu0 %v435
  %472 = vmatprep.subr.mxu0 0.0
  %473 = vmatpush1.msra.mxu0 %v436
  %474 = vmatprep.subr.mxu0 0.0
  %475 = vmatpush1.msra.mxu0 %v437
  %476 = vmatprep.subr.mxu0 0.0
  %477 = vmatpush1.msra.mxu0 %v438
  %478 = vmatprep.subr.mxu0 0.0
  %479 = vmatpush1.msra.mxu0 %v439
  %480 = vmatprep.subr.mxu0 0.0
  %481 = vmatpush1.msra.mxu0 %v440
  %482 = vmatprep.subr.mxu0 0.0
  %483 = vmatpush1.msra.mxu0 %v441
  %484 = vmatprep.subr.mxu0 0.0
  %485 = vmatpush1.msra.mxu0 0.0
  %486 = vmatprep.subr.mxu0 0.0
  %487 = vmatpush1.msra.mxu0 0.0
  %488 = vmatprep.subr.mxu0 0.0
  %489 = vmatpush1.msra.mxu0 0.0
  %490 = vmatprep.subr.mxu0 0.0
  %491 = vmatpush1.msra.mxu0 0.0
  %492 = vmatprep.subr.mxu0 0.0
  %493 = vmatpush1.msra.mxu0 0.0
  %494 = vmatprep.subr.mxu0 0.0
  %495 = vmatpush1.msra.mxu0 0.0
  %496 = vmatprep.subr.mxu0 0.0
  %497 = vmatpush1.msra.mxu0 0.0
  %498 = vmatprep.subr.mxu0 0.0
  %499 = vmatpush1.msra.mxu0 0.0
  %500 = vmatprep.subr.mxu0 0.0
  %501 = vmatpush1.msra.mxu0 0.0
  %502 = vmatprep.subr.mxu0 0.0
  %503 = vmatpush1.msra.mxu0 0.0
  %504 = vmatprep.subr.mxu0 0.0
  %505 = vmatpush1.msra.mxu0 0.0
  %506 = vmatprep.subr.mxu0 0.0
  %507 = vmatpush1.msra.mxu0 0.0
  %508 = vmatprep.subr.mxu0 0.0
  %509 = vmatpush1.msra.mxu0 0.0
  %510 = vmatprep.subr.mxu0 0.0
  %511 = vmatpush1.msra.mxu0 0.0
  %512 = vmatprep.subr.mxu0 0.0
  %513 = vmatpush1.msra.mxu0 0.0
  %514 = vmatprep.subr.mxu0 0.0
  %515 = vmatpush1.msra.mxu0 0.0
  %516 = vmatprep.mubr.f32.mxu0 0.0
  %517 = vmatmul.mubr.f32.gmra.mrb[0].mxu0 %v447
  %v518 = vpop.f32.mrb[0].mxu0
  %v519 = vadd.f32 0.0, %v518
  %v520 = vpop.f32.mrb[0].mxu0
  %521 = vmatprep.mubr.f32.mxu0 0.0
  %522 = vmatmul.mubr.f32.gmra.mrb[0].mxu0 %v448
  %v523 = vpop.f32.mrb[0].mxu0
  %v524 = vadd.f32 0.0, %v523
  %v525 = vpop.f32.mrb[0].mxu0
  %526 = vmatprep.mubr.f32.mxu0 0.0
  %527 = vmatmul.mubr.f32.gmra.mrb[0].mxu0 %v449
  %v528 = vpop.f32.mrb[0].mxu0
  %v529 = vadd.f32 0.0, %v528
  %v530 = vpop.f32.mrb[0].mxu0
  %531 = vmatprep.mubr.f32.mxu0 0.0
  %532 = vmatmul.mubr.f32.gmra.mrb[0].mxu0 %v450
  %v533 = vpop.f32.mrb[0].mxu0
  %v534 = vadd.f32 0.0, %v533
  %v535 = vpop.f32.mrb[0].mxu0
  %536 = vmatprep.mubr.f32.mxu0 0.0
  %537 = vmatmul.mubr.f32.gmra.mrb[0].mxu0 %v451
  %v538 = vpop.f32.mrb[0].mxu0
  %v539 = vadd.f32 0.0, %v538
  %v540 = vpop.f32.mrb[0].mxu0
  %541 = vdwg.mxu0
  %v542 = vadd.f32 %v349, 1.0
  %v543 = vlaneseq
  %v544 = vshrl.u32 %v543, 7
  %v545 = vsub.s32 1, %v544
  %v546 = vrot.slane %v542, %v545
  %v547 = vmul.f32 %v546, %v361
  %v548 = vmul.f32 %v546, %v362
  %v549 = vmul.f32 %v546, %v363
  %v550 = vmul.f32 %v546, %v364
  %v551 = vsub.f32 %v519, %v547
  %v552 = vsub.f32 %v524, %v548
  %v553 = vsub.f32 %v529, %v549
  %v554 = vsub.f32 %v534, %v550
  %v555 = vsub.f32 %v539, %v369
  %v557 = vrot.slane %v349, 1
  %v559 = vsub.f32 %v555, %v557
  %v560 = vadd.f32 %v370, %v551
  %v561 = vadd.f32 %v371, %v552
  %v562 = vadd.f32 %v372, %v553
  %v563 = vadd.f32 %v373, %v554
  %v565 = vrot.slane %v559, 7
  %v567 = vadd.f32 %v377, %v565
  %v568 = vadd.f32 %v567, 1e-08
  %v569 = vrcp.pop %v568
  %v570 = vmul.f32 1.0, %v569
  %v571 = vlaneseq
  %v572 = vshrl.u32 %v571, 7
  %v573 = vsub.s32 1, %v572
  %v574 = vrot.slane %v570, %v573
  %v575 = vmul.f32 %v560, %v574
  %v576 = vmul.f32 %v561, %v574
  %v577 = vmul.f32 %v562, %v574
  %v578 = vmul.f32 %v563, %v574
  %v579 = vmul.f32 %v575, %v575
  %v580 = vmul.f32 %v576, %v576
  %v581 = vmul.f32 %v577, %v577
  %v582 = vmul.f32 %v578, %v578
  %v583 = vadd.f32 %v579, %v580
  %v584 = vadd.f32 %v583, %v581
  %v585 = vadd.f32 %v584, %v582
  %v586 = vrot.slane %v585, 4
  %v587 = vadd.f32 %v585, %v586
  %v588 = vrot.slane %v587, 2
  %v589 = vadd.f32 %v587, %v588
  %v590 = vrot.slane %v589, 1
  %v591 = vadd.f32 %v589, %v590
  %v592 = vmul.f32 %v575, %v14
  %v593 = vmul.f32 %v576, %v15
  %v594 = vmul.f32 %v577, %v16
  %v595 = vmul.f32 %v578, %v17
  %v596 = vadd.f32 %v592, %v593
  %v597 = vadd.f32 %v596, %v594
  %v598 = vadd.f32 %v597, %v595
  %v599 = vrot.slane %v598, 4
  %v600 = vadd.f32 %v598, %v599
  %v601 = vrot.slane %v600, 2
  %v602 = vadd.f32 %v600, %v601
  %v603 = vrot.slane %v602, 1
  %v604 = vadd.f32 %v602, %v603
  %v605 = vmax.f32 %v591, 1e-24
  %v606 = vrsqrt.pop %v605
  %v607 = vmul.f32 %v604, %v606
  %v608 = vmax.f32 %v30, 1e-24
  %v609 = vrsqrt.pop %v608
  %v610 = vmul.f32 %v607, %v609
  %v611 = vld [vmem:[%s2 + $0x80] sm:$0x1]
  %v612 = vand.u32 %v611, 16777215
  %v613 = vcvt.s32.f32 %v612
  %v614 = vadd.f32 %v613, 0.5
  %v615 = vmul.f32 %v614, 5.9604645e-08
  %v616 = vlog2.pop %v615
  %v617 = vmul.f32 %v616, 0.6931472
  %v618 = vsub.f32 0.0, %v617
  %v619 = vlog2.pop %v618
  %v620 = vmul.f32 %v619, 0.6931472
  %v621 = vsub.f32 %v610, %v620
  %622 = vst [vmem:[%s3] sm:$0x1] %v621
  // Predicated region
  $region14: #{local_graph_forward.1} parent=0 // pred_check
    _
  $region15: #{local_graph_forward.1} parent=0 // pred_check_branch
    %624 = sbr.rel (0) target = $region17
  $region16: #{local_graph_forward.1} parent=0 // pred_region
    _
  $region17: #{local_graph_forward.1} parent=0 // pred_fallthru
    _
  // Predicated region
  $region18: #{local_graph_forward.1} parent=0 // pred_check
    _
  $region19: #{local_graph_forward.1} parent=0 // pred_check_branch
    %626 = sbr.rel (0) target = $region21
  $region20: #{local_graph_forward.1} parent=0 // pred_region
    _
  $region21: #{local_graph_forward.1} parent=0 // pred_fallthru
    _

</llo_original>
